<compile_context>
chip_gen: v5e
topology: v5e:2x2
jax: 0.10.0
libtpu: 0.0.40
codegen_flags: <defaults>
</compile_context>

<pallas_src>
import jax
import jax.numpy as jnp
from jax.experimental import pallas as pl
from jax.experimental.pallas import tpu as pltpu


def gcn_kernel(adj_ref, x_ref, w1_ref, b1_ref, w2_ref, b2_ref,
               wf1_ref, bf1_ref, wf2_ref, bf2_ref, out_ref):
    TB, N, _ = adj_ref.shape
    Cin = x_ref.shape[-1]
    H = w1_ref.shape[-1]

    adj = adj_ref[...].astype(jnp.float32)        # (TB, N, N)   bf16 -> f32
    x = x_ref[...]                                # (TB, N, Cin)

    # --- GCNConv layer 1:  relu( (Â X) W1 + b1 ) ------------------------------
    # Â·X first (Cin < H), then one flattened (TB*N, Cin) x (Cin, H) MXU dot.
    agg1 = jnp.einsum("bij,bjc->bic", adj, x,
                      preferred_element_type=jnp.float32)            # (TB, N, Cin)
    h = jnp.dot(agg1.reshape(TB * N, Cin), w1_ref[...],
                preferred_element_type=jnp.float32) + b1_ref[...]     # (TB*N, H)
    h = jnp.maximum(h, 0.0)

    # --- GCNConv layer 2:  relu( Â (H W2) + b2 ) ------------------------------
    hw = jnp.dot(h, w2_ref[...],
                 preferred_element_type=jnp.float32).reshape(TB, N, H)
    agg2 = jnp.einsum("bij,bjc->bic", adj, hw,
                      preferred_element_type=jnp.float32)             # (TB, N, H)
    h2 = jnp.maximum(agg2.reshape(TB * N, H) + b2_ref[...], 0.0)
    h2 = h2.reshape(TB, N, H)

    # --- global max pool over the node axis -----------------------------------
    # TODO(synk): for ragged graphs padded to N nodes, mask padded rows with -inf
    # before this max (here every graph has exactly N real nodes).
    pooled = jnp.max(h2, axis=1)                                      # (TB, H)

    # --- MLP head, batched over the TB graphs of this block --------------------
    z = jnp.dot(pooled, wf1_ref[...],
                preferred_element_type=jnp.float32) + bf1_ref[...]
    z = jnp.maximum(z, 0.0)                                           # (TB, Hh)

    logits = jnp.dot(z, wf2_ref[...],
                     preferred_element_type=jnp.float32) + bf2_ref[...]  # (TB, Cpad)
    # Padded fc2 columns carry bias -1e30 (set in the wrapper): exp(-1e30 - m) == 0,
    # so this 128-lane log_softmax is exact for the real class columns.
    m = jnp.max(logits, axis=-1, keepdims=True)
    lse = jnp.log(jnp.sum(jnp.exp(logits - m), axis=-1, keepdims=True)) + m
    out_ref[...] = logits - lse                                       # (TB, Cpad)


def gcn_forward(adj, x, params, *, block_graphs=8):
    """adj: (B,N,N) normalized adjacency; x: (B,N,Cin) node features."""
    B, N, Cin = x.shape
    H = params["w1"].shape[1]
    Hh = params["wf1"].shape[1]
    C = params["wf2"].shape[1]

    # Graphs per grid step: either the requested block (multiple of 8 for dense
    # sublane stores) or the whole batch.
    TB = block_graphs if (B % block_graphs == 0 and block_graphs <= B) else B

    # Lane-dense output slab: pad the class axis up to a multiple of 128.
    Cpad = max(128, ((C + 127) // 128) * 128)
    wf2_p = jnp.zeros((Hh, Cpad), jnp.float32).at[:, :C].set(params["wf2"])
    bf2_p = jnp.full((1, Cpad), -1e30, jnp.float32).at[:, :C].set(params["bf2"])

    adj_bf16 = adj.astype(jnp.bfloat16)   # halve the dominant HBM stream

    def const2d(shape):
        return pl.BlockSpec(shape, lambda b: (0, 0))

    out_padded = pl.pallas_call(
        gcn_kernel,
        out_shape=jax.ShapeDtypeStruct((B, Cpad), jnp.float32),
        grid=(B // TB,),
        in_specs=[
            pl.BlockSpec((TB, N, N),   lambda b: (b, 0, 0)),   # Â (bf16)
            pl.BlockSpec((TB, N, Cin), lambda b: (b, 0, 0)),   # node features
            const2d((Cin, H)),   const2d((1, H)),              # GCNConv 1
            const2d((H,   H)),   const2d((1, H)),              # GCNConv 2
            const2d((H,  Hh)),   const2d((1, Hh)),             # fc1
            const2d((Hh, Cpad)), const2d((1, Cpad)),           # fc2 (lane-padded)
        ],
        out_specs=pl.BlockSpec((TB, Cpad), lambda b: (b, 0)),
        compiler_params=pltpu.CompilerParams(
            dimension_semantics=("parallel",)),
    )(adj_bf16, x,
      params["w1"], params["b1"], params["w2"], params["b2"],
      params["wf1"], params["bf1"], wf2_p, bf2_p)

    return out_padded[:, :C]


# ------------------------- plain-JAX glue / reference -------------------------

def build_norm_adj(key, B, N, p=0.3):
    """Random symmetric graph per batch element -> D^-1/2 (A+I) D^-1/2."""
    a = (jax.random.uniform(key, (B, N, N)) < p).astype(jnp.float32)
    a = jnp.maximum(a, jnp.swapaxes(a, 1, 2))                          # undirected
    a = jnp.minimum(a + jnp.eye(N, dtype=jnp.float32)[None], 1.0)      # self loops
    deg = jnp.sum(a, axis=-1)                                          # (B, N)
    dinv = 1.0 / jnp.sqrt(deg)
    return a * dinv[:, :, None] * dinv[:, None, :]


def init_params(key, in_channels, hidden_dim, num_classes):
    ks = jax.random.split(key, 8)
    def w(k, shape):
        return jax.random.normal(k, shape, jnp.float32) * 0.1
    return {
        "w1":  w(ks[0], (in_channels, hidden_dim)),
        "b1":  w(ks[1], (1, hidden_dim)),
        "w2":  w(ks[2], (hidden_dim, hidden_dim)),
        "b2":  w(ks[3], (1, hidden_dim)),
        "wf1": w(ks[4], (hidden_dim, hidden_dim // 2)),
        "bf1": w(ks[5], (1, hidden_dim // 2)),
        "wf2": w(ks[6], (hidden_dim // 2, num_classes)),
        "bf2": w(ks[7], (1, num_classes)),
    }


def gcn_reference(adj, x, p):
    h = jnp.maximum(jnp.einsum("bij,bjc->bic", adj, x @ p["w1"]) + p["b1"], 0.0)
    h = jnp.maximum(jnp.einsum("bij,bjc->bic", adj, h @ p["w2"]) + p["b2"], 0.0)
    pooled = jnp.max(h, axis=1)                                        # (B, H)
    z = jnp.maximum(pooled @ p["wf1"] + p["bf1"], 0.0)
    logits = z @ p["wf2"] + p["bf2"]
    return jax.nn.log_softmax(logits, axis=1)


if __name__ == "__main__":
    B, N, Cin, hidden, num_classes = 16, 16, 8, 32, 4

    key = jax.random.PRNGKey(0)
    k_adj, k_x, k_p = jax.random.split(key, 3)

    adj = build_norm_adj(k_adj, B, N)                  # (B, N, N)
    x = jax.random.normal(k_x, (B, N, Cin), jnp.float32)
    params = init_params(k_p, Cin, hidden, num_classes)

    out = gcn_forward(adj, x, params, block_graphs=8)  # grid=(2,): both v7x TCs busy
    out = jax.block_until_ready(out)

    # Reference sees the same bf16-quantized adjacency the kernel streams from HBM.
    adj_q = adj.astype(jnp.bfloat16).astype(jnp.float32)
    ref = gcn_reference(adj_q, x, params)

    assert out.shape == (B, num_classes)
    assert jnp.allclose(out, ref, atol=1e-4, rtol=1e-4), "mismatch vs reference"
    print("KERNEL_OK")
</pallas_src>

<mosaic_0001>
module attributes {stable_mosaic.version = 11 : i64} {
  func.func @gcn_kernel(%arg0: i32, %arg1: memref<8x16x16xbf16, #tpu.memory_space<vmem>>, %arg2: memref<8x16x8xf32, #tpu.memory_space<vmem>>, %arg3: memref<8x32xf32, #tpu.memory_space<vmem>>, %arg4: memref<1x32xf32, #tpu.memory_space<vmem>>, %arg5: memref<32x32xf32, #tpu.memory_space<vmem>>, %arg6: memref<1x32xf32, #tpu.memory_space<vmem>>, %arg7: memref<32x16xf32, #tpu.memory_space<vmem>>, %arg8: memref<1x16xf32, #tpu.memory_space<vmem>>, %arg9: memref<16x128xf32, #tpu.memory_space<vmem>>, %arg10: memref<1x128xf32, #tpu.memory_space<vmem>>, %arg11: memref<8x128xf32, #tpu.memory_space<vmem>>) attributes {dimension_semantics = [#tpu.dimension_semantics<parallel>], iteration_bounds = array<i64: 2>, scalar_prefetch = 0 : i64, scratch_operands = 0 : i64, tpu.core_type = #tpu.core_type<tc>, window_params = [{transform_indices = @transform_0, window_bounds = array<i64: 8, 16, 16>}, {transform_indices = @transform_1, window_bounds = array<i64: 8, 16, 8>}, {pipeline_mode = #tpu.pipeline_mode<synchronous>, transform_indices = @transform_2, window_bounds = array<i64: 8, 32>}, {pipeline_mode = #tpu.pipeline_mode<synchronous>, transform_indices = @transform_3, window_bounds = array<i64: 1, 32>}, {pipeline_mode = #tpu.pipeline_mode<synchronous>, transform_indices = @transform_4, window_bounds = array<i64: 32, 32>}, {pipeline_mode = #tpu.pipeline_mode<synchronous>, transform_indices = @transform_5, window_bounds = array<i64: 1, 32>}, {pipeline_mode = #tpu.pipeline_mode<synchronous>, transform_indices = @transform_6, window_bounds = array<i64: 32, 16>}, {pipeline_mode = #tpu.pipeline_mode<synchronous>, transform_indices = @transform_7, window_bounds = array<i64: 1, 16>}, {pipeline_mode = #tpu.pipeline_mode<synchronous>, transform_indices = @transform_8, window_bounds = array<i64: 16, 128>}, {pipeline_mode = #tpu.pipeline_mode<synchronous>, transform_indices = @transform_9, window_bounds = array<i64: 1, 128>}, {transform_indices = @transform_10, window_bounds = array<i64: 8, 128>}]} {
    %c0 = arith.constant 0 : index
    %c0_0 = arith.constant 0 : index
    %c0_1 = arith.constant 0 : index
    %0 = vector.load %arg1[%c0, %c0_0, %c0_1] : memref<8x16x16xbf16, #tpu.memory_space<vmem>>, vector<8x16x16xbf16>
    %1 = arith.extf %0 : vector<8x16x16xbf16> to vector<8x16x16xf32>
    %c0_2 = arith.constant 0 : index
    %c0_3 = arith.constant 0 : index
    %c0_4 = arith.constant 0 : index
    %2 = vector.load %arg2[%c0_2, %c0_3, %c0_4] : memref<8x16x8xf32, #tpu.memory_space<vmem>>, vector<8x16x8xf32>
    "tpu.trace_start"() <{level = 10 : i32, message = "bij,bjc->bic"}> : () -> ()
    %cst = arith.constant dense<0.000000e+00> : vector<8x16x8xf32>
    %3 = tpu.matmul %1, %2, %cst {dimension_numbers = #tpu.dot_dimension_numbers<[2], [1], [1], [2], [0, 0, 0, 1, 1, 2], [0], [0]>} : vector<8x16x16xf32>, vector<8x16x8xf32>, vector<8x16x8xf32> -> vector<8x16x8xf32>
    "tpu.trace_stop"() : () -> ()
    %4 = vector.shape_cast %3 : vector<8x16x8xf32> to vector<128x8xf32>
    %c0_5 = arith.constant 0 : index
    %c0_6 = arith.constant 0 : index
    %5 = vector.load %arg3[%c0_5, %c0_6] : memref<8x32xf32, #tpu.memory_space<vmem>>, vector<8x32xf32>
    %cst_7 = arith.constant dense<0.000000e+00> : vector<128x32xf32>
    %6 = tpu.matmul %4, %5, %cst_7 {dimension_numbers = #tpu.dot_dimension_numbers<[1], [0], [0], [1], [0, 0, 1, 1], [], []>} : vector<128x8xf32>, vector<8x32xf32>, vector<128x32xf32> -> vector<128x32xf32>
    %c0_8 = arith.constant 0 : index
    %c0_9 = arith.constant 0 : index
    %7 = vector.load %arg4[%c0_8, %c0_9] : memref<1x32xf32, #tpu.memory_space<vmem>>, vector<1x32xf32>
    %8 = vector.broadcast %7 : vector<1x32xf32> to vector<128x32xf32>
    %9 = arith.addf %6, %8 : vector<128x32xf32>
    %cst_10 = arith.constant 0.000000e+00 : f32
    %10 = vector.broadcast %cst_10 : f32 to vector<128x32xf32>
    %11 = arith.maximumf %9, %10 : vector<128x32xf32>
    %c0_11 = arith.constant 0 : index
    %c0_12 = arith.constant 0 : index
    %12 = vector.load %arg5[%c0_11, %c0_12] : memref<32x32xf32, #tpu.memory_space<vmem>>, vector<32x32xf32>
    %cst_13 = arith.constant dense<0.000000e+00> : vector<128x32xf32>
    %13 = tpu.matmul %11, %12, %cst_13 {dimension_numbers = #tpu.dot_dimension_numbers<[1], [0], [0], [1], [0, 0, 1, 1], [], []>} : vector<128x32xf32>, vector<32x32xf32>, vector<128x32xf32> -> vector<128x32xf32>
    %14 = vector.shape_cast %13 : vector<128x32xf32> to vector<8x16x32xf32>
    "tpu.trace_start"() <{level = 10 : i32, message = "bij,bjc->bic"}> : () -> ()
    %cst_14 = arith.constant dense<0.000000e+00> : vector<8x16x32xf32>
    %15 = tpu.matmul %1, %14, %cst_14 {dimension_numbers = #tpu.dot_dimension_numbers<[2], [1], [1], [2], [0, 0, 0, 1, 1, 2], [0], [0]>} : vector<8x16x16xf32>, vector<8x16x32xf32>, vector<8x16x32xf32> -> vector<8x16x32xf32>
    "tpu.trace_stop"() : () -> ()
    %16 = vector.shape_cast %15 : vector<8x16x32xf32> to vector<128x32xf32>
    %c0_15 = arith.constant 0 : index
    %c0_16 = arith.constant 0 : index
    %17 = vector.load %arg6[%c0_15, %c0_16] : memref<1x32xf32, #tpu.memory_space<vmem>>, vector<1x32xf32>
    %18 = vector.broadcast %17 : vector<1x32xf32> to vector<128x32xf32>
    %19 = arith.addf %16, %18 : vector<128x32xf32>
    %cst_17 = arith.constant 0.000000e+00 : f32
    %20 = vector.broadcast %cst_17 : f32 to vector<128x32xf32>
    %21 = arith.maximumf %19, %20 : vector<128x32xf32>
    %22 = vector.shape_cast %21 : vector<128x32xf32> to vector<8x16x32xf32>
    %cst_18 = arith.constant dense<0xFF800000> : vector<8x32xf32>
    %23 = vector.multi_reduction <maximumf>, %22, %cst_18 [1] : vector<8x16x32xf32> to vector<8x32xf32>
    %c0_19 = arith.constant 0 : index
    %c0_20 = arith.constant 0 : index
    %24 = vector.load %arg7[%c0_19, %c0_20] : memref<32x16xf32, #tpu.memory_space<vmem>>, vector<32x16xf32>
    %cst_21 = arith.constant dense<0.000000e+00> : vector<8x16xf32>
    %25 = tpu.matmul %23, %24, %cst_21 {dimension_numbers = #tpu.dot_dimension_numbers<[1], [0], [0], [1], [0, 0, 1, 1], [], []>} : vector<8x32xf32>, vector<32x16xf32>, vector<8x16xf32> -> vector<8x16xf32>
    %c0_22 = arith.constant 0 : index
    %c0_23 = arith.constant 0 : index
    %26 = vector.load %arg8[%c0_22, %c0_23] : memref<1x16xf32, #tpu.memory_space<vmem>>, vector<1x16xf32>
    %27 = vector.broadcast %26 : vector<1x16xf32> to vector<8x16xf32>
    %28 = arith.addf %25, %27 : vector<8x16xf32>
    %cst_24 = arith.constant 0.000000e+00 : f32
    %29 = vector.broadcast %cst_24 : f32 to vector<8x16xf32>
    %30 = arith.maximumf %28, %29 : vector<8x16xf32>
    %c0_25 = arith.constant 0 : index
    %c0_26 = arith.constant 0 : index
    %31 = vector.load %arg9[%c0_25, %c0_26] : memref<16x128xf32, #tpu.memory_space<vmem>>, vector<16x128xf32>
    %cst_27 = arith.constant dense<0.000000e+00> : vector<8x128xf32>
    %32 = tpu.matmul %30, %31, %cst_27 {dimension_numbers = #tpu.dot_dimension_numbers<[1], [0], [0], [1], [0, 0, 1, 1], [], []>} : vector<8x16xf32>, vector<16x128xf32>, vector<8x128xf32> -> vector<8x128xf32>
    %c0_28 = arith.constant 0 : index
    %c0_29 = arith.constant 0 : index
    %33 = vector.load %arg10[%c0_28, %c0_29] : memref<1x128xf32, #tpu.memory_space<vmem>>, vector<1x128xf32>
    %34 = vector.broadcast %33 : vector<1x128xf32> to vector<8x128xf32>
    %35 = arith.addf %32, %34 : vector<8x128xf32>
    %cst_30 = arith.constant dense<0xFF800000> : vector<8xf32>
    %36 = vector.multi_reduction <maximumf>, %35, %cst_30 [1] : vector<8x128xf32> to vector<8xf32>
    %37 = vector.shape_cast %36 : vector<8xf32> to vector<8x1xf32>
    %38 = vector.broadcast %37 : vector<8x1xf32> to vector<8x128xf32>
    %39 = arith.subf %35, %38 : vector<8x128xf32>
    %40 = math.exp %39 : vector<8x128xf32>
    %cst_31 = arith.constant dense<0.000000e+00> : vector<8xf32>
    %41 = vector.multi_reduction <add>, %40, %cst_31 [1] : vector<8x128xf32> to vector<8xf32>
    %42 = vector.shape_cast %41 : vector<8xf32> to vector<8x1xf32>
    %43 = math.log %42 : vector<8x1xf32>
    %44 = arith.addf %43, %37 : vector<8x1xf32>
    %45 = vector.broadcast %44 : vector<8x1xf32> to vector<8x128xf32>
    %46 = arith.subf %35, %45 : vector<8x128xf32>
    %c0_32 = arith.constant 0 : index
    %c0_33 = arith.constant 0 : index
    %47 = vector.load %arg11[%c0_32, %c0_33] : memref<8x128xf32, #tpu.memory_space<vmem>>, vector<8x128xf32>
    tpu.vector_store %arg11[%c0_32, %c0_33], %46 {strides = array<i32>} : memref<8x128xf32, #tpu.memory_space<vmem>>, vector<8x128xf32>,
    return
  }
  func.func @transform_0(%arg0: i32) -> (i32, i32, i32) {
    %c0_i32 = arith.constant 0 : i32
    %c0_i32_0 = arith.constant 0 : i32
    %c0_i32_1 = arith.constant 0 : i32
    return %arg0, %c0_i32, %c0_i32_0 : i32, i32, i32
  }
  func.func @transform_1(%arg0: i32) -> (i32, i32, i32) {
    %c0_i32 = arith.constant 0 : i32
    %c0_i32_0 = arith.constant 0 : i32
    %c0_i32_1 = arith.constant 0 : i32
    return %arg0, %c0_i32, %c0_i32_0 : i32, i32, i32
  }
  func.func @transform_2(%arg0: i32) -> (i32, i32) {
    %c0_i32 = arith.constant 0 : i32
    %c0_i32_0 = arith.constant 0 : i32
    %c0_i32_1 = arith.constant 0 : i32
    return %c0_i32, %c0_i32_0 : i32, i32
  }
  func.func @transform_3(%arg0: i32) -> (i32, i32) {
    %c0_i32 = arith.constant 0 : i32
    %c0_i32_0 = arith.constant 0 : i32
    %c0_i32_1 = arith.constant 0 : i32
    return %c0_i32, %c0_i32_0 : i32, i32
  }
  func.func @transform_4(%arg0: i32) -> (i32, i32) {
    %c0_i32 = arith.constant 0 : i32
    %c0_i32_0 = arith.constant 0 : i32
    %c0_i32_1 = arith.constant 0 : i32
    return %c0_i32, %c0_i32_0 : i32, i32
  }
  func.func @transform_5(%arg0: i32) -> (i32, i32) {
    %c0_i32 = arith.constant 0 : i32
    %c0_i32_0 = arith.constant 0 : i32
    %c0_i32_1 = arith.constant 0 : i32
    return %c0_i32, %c0_i32_0 : i32, i32
  }
  func.func @transform_6(%arg0: i32) -> (i32, i32) {
    %c0_i32 = arith.constant 0 : i32
    %c0_i32_0 = arith.constant 0 : i32
    %c0_i32_1 = arith.constant 0 : i32
    return %c0_i32, %c0_i32_0 : i32, i32
  }
  func.func @transform_7(%arg0: i32) -> (i32, i32) {
    %c0_i32 = arith.constant 0 : i32
    %c0_i32_0 = arith.constant 0 : i32
    %c0_i32_1 = arith.constant 0 : i32
    return %c0_i32, %c0_i32_0 : i32, i32
  }
  func.func @transform_8(%arg0: i32) -> (i32, i32) {
    %c0_i32 = arith.constant 0 : i32
    %c0_i32_0 = arith.constant 0 : i32
    %c0_i32_1 = arith.constant 0 : i32
    return %c0_i32, %c0_i32_0 : i32, i32
  }
  func.func @transform_9(%arg0: i32) -> (i32, i32) {
    %c0_i32 = arith.constant 0 : i32
    %c0_i32_0 = arith.constant 0 : i32
    %c0_i32_1 = arith.constant 0 : i32
    return %c0_i32, %c0_i32_0 : i32, i32
  }
  func.func @transform_10(%arg0: i32) -> (i32, i32) {
    %c0_i32 = arith.constant 0 : i32
    %c0_i32_0 = arith.constant 0 : i32
    return %arg0, %c0_i32 : i32, i32
  }
}

</mosaic_0001>

<llo_original>
// kernel: tpu_custom_call.1
$region0: #{tpu_custom_call.1}
  #allocation0 [shape = 'u32[]', space=smem, size = 0x4, offset = 0x4, fixed_abs, tag = 'smem constant byte address 0x4 - core index']
  #allocation1 [shape = 'u32[72,128]{1,0:T(1,128)}', space=vmem, size = 0x9000, scoped, tag = 'internal scratch']
  %s0 = inlined_call_operand.vmem [shape: bf16[16,16,16], index: 0, kind: input, shape index: {}]
  %s1 = inlined_call_operand.vmem [shape: f32[16,16,8], index: 1, kind: input, shape index: {}]
  %s2 = inlined_call_operand.vmem [shape: f32[8,32], index: 2, kind: input, shape index: {}]
  %s3 = inlined_call_operand.vmem [shape: f32[1,32], index: 3, kind: input, shape index: {}]
  %s4 = inlined_call_operand.vmem [shape: f32[32,32], index: 4, kind: input, shape index: {}]
  %s5 = inlined_call_operand.vmem [shape: f32[1,32], index: 5, kind: input, shape index: {}]
  %s6 = inlined_call_operand.vmem [shape: f32[32,16], index: 6, kind: input, shape index: {}]
  %s7 = inlined_call_operand.vmem [shape: f32[1,16], index: 7, kind: input, shape index: {}]
  %s8 = inlined_call_operand.vmem [shape: f32[16,128], index: 8, kind: input, shape index: {}]
  %s9 = inlined_call_operand.vmem [shape: f32[1,128], index: 9, kind: input, shape index: {}]
  %s10 = inlined_call_operand.hbm [shape: f32[16,128], index: 10, kind: output, shape index: {}]
  %s11 = sld [smem:[#allocation0]]
  $region73: #{tpu_custom_call.1} parent=0
    _
  %s13 = ssub.s32 1, %s11
  %s14 = scalar_select 0, %s13, %s11
  $region1: #{tpu_custom_call.1} parent=0
    #allocation2 [shape = 'u8[8192]{0}', space=vmem, size = 0x2000, scoped, tag = 'output window, operand 0']
    #allocation3 [shape = 's32[2]{0}', space=sflag, size = 0x8, scoped, tag = 'scoped memory for tpu_custom_call.1']
    %15 = vsyncpa [#allocation3], 0
    %s16 = scalar_lea.sflag [#allocation3], 1
    %17 = vsyncpa %s16, 0
    loop: start=0, step=1, limit=4
    $region2: #{tpu_custom_call.1} parent=1 // loop_pre_header
      _
    $region3: #{tpu_custom_call.1} parent=1 // loop_header
      %s19 = sphi 0, %s23
      %p20 = scmp.ge.s32.totalorder %s19, 4
      %s29 = sphi 0, %s31
      %s32 = sphi 0, %s29
      %s33 = sphi 0, %s32
      %s49 = sphi 0, %s33
      %s55 = sphi 0, %s57
      %s58 = sphi 0, %s55
      %s59 = sphi 0, %s58
      %s75 = sphi 0, %s59
      %s79 = sphi 0, %s79
      %s81 = sphi 0, %s79
      %s82 = sphi 0, %s81
      %s96 = sphi 0, %s82
      %s100 = sphi 0, %s100
      %s102 = sphi 0, %s100
      %s103 = sphi 0, %s102
      %s117 = sphi 0, %s103
      %s121 = sphi 0, %s121
      %s123 = sphi 0, %s121
      %s124 = sphi 0, %s123
      %s138 = sphi 0, %s124
      %s142 = sphi 0, %s142
      %s144 = sphi 0, %s142
      %s145 = sphi 0, %s144
      %s159 = sphi 0, %s145
      %s163 = sphi 0, %s163
      %s165 = sphi 0, %s163
      %s166 = sphi 0, %s165
      %s180 = sphi 0, %s166
      %s184 = sphi 0, %s184
      %s186 = sphi 0, %s184
      %s187 = sphi 0, %s186
      %s201 = sphi 0, %s187
      %s205 = sphi 0, %s205
      %s207 = sphi 0, %s205
      %s208 = sphi 0, %s207
      %s222 = sphi 0, %s208
      %s226 = sphi 0, %s226
      %s228 = sphi 0, %s226
      %s229 = sphi 0, %s228
      %s243 = sphi 0, %s229
      %s249 = sphi 0, %s251
      %s252 = sphi 0, %s249
      %s253 = sphi 0, %s252
      %s269 = sphi 0, %s253
    $region4: #{tpu_custom_call.1} parent=1 // loop_header_branch
      %22 = sbr.rel (%p20) target = $region8
    $region5: #{tpu_custom_call.1} parent=1 // loop_body
      %s24 = ssub.s32 %s19, 1
      %s25 = ssub.s32 %s19, 2
      %s26 = sadd.s32 %s19, 1
      %s27 = ssub.s32 %s19, %s26
      %p28 = scmp.eq.s32.totalorder %s27, 0
      %s30 = sadd.s32 %s29, 1
      %s31 = scalar_select %p28, %s29, %s30
      %p34 = pneg %p28
      %p35 = scmp.eq.s32.totalorder %s19, 1
      %p36 = por %p34, %p35
      %p37 = scmp.ne.s32.totalorder %s29, %s32
      %p38 = scmp.eq.s32.totalorder %s19, 0
      %p39 = por %p37, %p38
      %p40 = scmp.ne.s32.totalorder %s29, %s32
      %p41 = scmp.eq.s32.totalorder %s24, 1
      %p42 = por %p40, %p41
      %p43 = scmp.ne.s32.totalorder %s32, %s33
      %p44 = scmp.eq.s32.totalorder %s24, 0
      %p45 = por %p43, %p44
      %p46 = scmp.ne.s32.totalorder %s32, %s33
      %p47 = scmp.eq.s32.totalorder %s25, 1
      %p48 = por %p46, %p47
      %p50 = scmp.ne.s32.totalorder %s33, %s49
      %p51 = scmp.eq.s32.totalorder %s25, 0
      %p52 = por %p50, %p51
      %s53 = ssub.s32 %s19, %s26
      %p54 = scmp.eq.s32.totalorder %s53, 0
      %s56 = sadd.s32 %s55, 1
      %s57 = scalar_select %p54, %s55, %s56
      %p60 = pneg %p54
      %p61 = scmp.eq.s32.totalorder %s19, 1
      %p62 = por %p60, %p61
      %p63 = scmp.ne.s32.totalorder %s55, %s58
      %p64 = scmp.eq.s32.totalorder %s19, 0
      %p65 = por %p63, %p64
      %p66 = scmp.ne.s32.totalorder %s55, %s58
      %p67 = scmp.eq.s32.totalorder %s24, 1
      %p68 = por %p66, %p67
      %p69 = scmp.ne.s32.totalorder %s58, %s59
      %p70 = scmp.eq.s32.totalorder %s24, 0
      %p71 = por %p69, %p70
      %p72 = scmp.ne.s32.totalorder %s58, %s59
      %p73 = scmp.eq.s32.totalorder %s25, 1
      %p74 = por %p72, %p73
      %p76 = scmp.ne.s32.totalorder %s59, %s75
      %p77 = scmp.eq.s32.totalorder %s25, 0
      %p78 = por %p76, %p77
      %s80 = sadd.s32 %s79, 1
      %p83 = scmp.eq.s32.totalorder %s19, 1
      %p84 = scmp.ne.s32.totalorder %s79, %s81
      %p85 = scmp.eq.s32.totalorder %s19, 0
      %p86 = por %p84, %p85
      %p87 = scmp.ne.s32.totalorder %s79, %s81
      %p88 = scmp.eq.s32.totalorder %s24, 1
      %p89 = por %p87, %p88
      %p90 = scmp.ne.s32.totalorder %s81, %s82
      %p91 = scmp.eq.s32.totalorder %s24, 0
      %p92 = por %p90, %p91
      %p93 = scmp.ne.s32.totalorder %s81, %s82
      %p94 = scmp.eq.s32.totalorder %s25, 1
      %p95 = por %p93, %p94
      %p97 = scmp.ne.s32.totalorder %s82, %s96
      %p98 = scmp.eq.s32.totalorder %s25, 0
      %p99 = por %p97, %p98
      %s101 = sadd.s32 %s100, 1
      %p104 = scmp.eq.s32.totalorder %s19, 1
      %p105 = scmp.ne.s32.totalorder %s100, %s102
      %p106 = scmp.eq.s32.totalorder %s19, 0
      %p107 = por %p105, %p106
      %p108 = scmp.ne.s32.totalorder %s100, %s102
      %p109 = scmp.eq.s32.totalorder %s24, 1
      %p110 = por %p108, %p109
      %p111 = scmp.ne.s32.totalorder %s102, %s103
      %p112 = scmp.eq.s32.totalorder %s24, 0
      %p113 = por %p111, %p112
      %p114 = scmp.ne.s32.totalorder %s102, %s103
      %p115 = scmp.eq.s32.totalorder %s25, 1
      %p116 = por %p114, %p115
      %p118 = scmp.ne.s32.totalorder %s103, %s117
      %p119 = scmp.eq.s32.totalorder %s25, 0
      %p120 = por %p118, %p119
      %s122 = sadd.s32 %s121, 1
      %p125 = scmp.eq.s32.totalorder %s19, 1
      %p126 = scmp.ne.s32.totalorder %s121, %s123
      %p127 = scmp.eq.s32.totalorder %s19, 0
      %p128 = por %p126, %p127
      %p129 = scmp.ne.s32.totalorder %s121, %s123
      %p130 = scmp.eq.s32.totalorder %s24, 1
      %p131 = por %p129, %p130
      %p132 = scmp.ne.s32.totalorder %s123, %s124
      %p133 = scmp.eq.s32.totalorder %s24, 0
      %p134 = por %p132, %p133
      %p135 = scmp.ne.s32.totalorder %s123, %s124
      %p136 = scmp.eq.s32.totalorder %s25, 1
      %p137 = por %p135, %p136
      %p139 = scmp.ne.s32.totalorder %s124, %s138
      %p140 = scmp.eq.s32.totalorder %s25, 0
      %p141 = por %p139, %p140
      %s143 = sadd.s32 %s142, 1
      %p146 = scmp.eq.s32.totalorder %s19, 1
      %p147 = scmp.ne.s32.totalorder %s142, %s144
      %p148 = scmp.eq.s32.totalorder %s19, 0
      %p149 = por %p147, %p148
      %p150 = scmp.ne.s32.totalorder %s142, %s144
      %p151 = scmp.eq.s32.totalorder %s24, 1
      %p152 = por %p150, %p151
      %p153 = scmp.ne.s32.totalorder %s144, %s145
      %p154 = scmp.eq.s32.totalorder %s24, 0
      %p155 = por %p153, %p154
      %p156 = scmp.ne.s32.totalorder %s144, %s145
      %p157 = scmp.eq.s32.totalorder %s25, 1
      %p158 = por %p156, %p157
      %p160 = scmp.ne.s32.totalorder %s145, %s159
      %p161 = scmp.eq.s32.totalorder %s25, 0
      %p162 = por %p160, %p161
      %s164 = sadd.s32 %s163, 1
      %p167 = scmp.eq.s32.totalorder %s19, 1
      %p168 = scmp.ne.s32.totalorder %s163, %s165
      %p169 = scmp.eq.s32.totalorder %s19, 0
      %p170 = por %p168, %p169
      %p171 = scmp.ne.s32.totalorder %s163, %s165
      %p172 = scmp.eq.s32.totalorder %s24, 1
      %p173 = por %p171, %p172
      %p174 = scmp.ne.s32.totalorder %s165, %s166
      %p175 = scmp.eq.s32.totalorder %s24, 0
      %p176 = por %p174, %p175
      %p177 = scmp.ne.s32.totalorder %s165, %s166
      %p178 = scmp.eq.s32.totalorder %s25, 1
      %p179 = por %p177, %p178
      %p181 = scmp.ne.s32.totalorder %s166, %s180
      %p182 = scmp.eq.s32.totalorder %s25, 0
      %p183 = por %p181, %p182
      %s185 = sadd.s32 %s184, 1
      %p188 = scmp.eq.s32.totalorder %s19, 1
      %p189 = scmp.ne.s32.totalorder %s184, %s186
      %p190 = scmp.eq.s32.totalorder %s19, 0
      %p191 = por %p189, %p190
      %p192 = scmp.ne.s32.totalorder %s184, %s186
      %p193 = scmp.eq.s32.totalorder %s24, 1
      %p194 = por %p192, %p193
      %p195 = scmp.ne.s32.totalorder %s186, %s187
      %p196 = scmp.eq.s32.totalorder %s24, 0
      %p197 = por %p195, %p196
      %p198 = scmp.ne.s32.totalorder %s186, %s187
      %p199 = scmp.eq.s32.totalorder %s25, 1
      %p200 = por %p198, %p199
      %p202 = scmp.ne.s32.totalorder %s187, %s201
      %p203 = scmp.eq.s32.totalorder %s25, 0
      %p204 = por %p202, %p203
      %s206 = sadd.s32 %s205, 1
      %p209 = scmp.eq.s32.totalorder %s19, 1
      %p210 = scmp.ne.s32.totalorder %s205, %s207
      %p211 = scmp.eq.s32.totalorder %s19, 0
      %p212 = por %p210, %p211
      %p213 = scmp.ne.s32.totalorder %s205, %s207
      %p214 = scmp.eq.s32.totalorder %s24, 1
      %p215 = por %p213, %p214
      %p216 = scmp.ne.s32.totalorder %s207, %s208
      %p217 = scmp.eq.s32.totalorder %s24, 0
      %p218 = por %p216, %p217
      %p219 = scmp.ne.s32.totalorder %s207, %s208
      %p220 = scmp.eq.s32.totalorder %s25, 1
      %p221 = por %p219, %p220
      %p223 = scmp.ne.s32.totalorder %s208, %s222
      %p224 = scmp.eq.s32.totalorder %s25, 0
      %p225 = por %p223, %p224
      %s227 = sadd.s32 %s226, 1
      %p230 = scmp.eq.s32.totalorder %s19, 1
      %p231 = scmp.ne.s32.totalorder %s226, %s228
      %p232 = scmp.eq.s32.totalorder %s19, 0
      %p233 = por %p231, %p232
      %p234 = scmp.ne.s32.totalorder %s226, %s228
      %p235 = scmp.eq.s32.totalorder %s24, 1
      %p236 = por %p234, %p235
      %p237 = scmp.ne.s32.totalorder %s228, %s229
      %p238 = scmp.eq.s32.totalorder %s24, 0
      %p239 = por %p237, %p238
      %p240 = scmp.ne.s32.totalorder %s228, %s229
      %p241 = scmp.eq.s32.totalorder %s25, 1
      %p242 = por %p240, %p241
      %p244 = scmp.ne.s32.totalorder %s229, %s243
      %p245 = scmp.eq.s32.totalorder %s25, 0
      %p246 = por %p244, %p245
      %s247 = ssub.s32 %s19, %s26
      %p248 = scmp.eq.s32.totalorder %s247, 0
      %s250 = sadd.s32 %s249, 1
      %s251 = scalar_select %p248, %s249, %s250
      %p254 = pneg %p248
      %p255 = scmp.eq.s32.totalorder %s19, 1
      %p256 = por %p254, %p255
      %p257 = scmp.ne.s32.totalorder %s249, %s252
      %p258 = scmp.eq.s32.totalorder %s19, 0
      %p259 = por %p257, %p258
      %p260 = scmp.ne.s32.totalorder %s249, %s252
      %p261 = scmp.eq.s32.totalorder %s24, 1
      %p262 = por %p260, %p261
      %p263 = scmp.ne.s32.totalorder %s252, %s253
      %p264 = scmp.eq.s32.totalorder %s24, 0
      %p265 = por %p263, %p264
      %p266 = scmp.ne.s32.totalorder %s252, %s253
      %p267 = scmp.eq.s32.totalorder %s25, 1
      %p268 = por %p266, %p267
      %p270 = scmp.ne.s32.totalorder %s253, %s269
      %p271 = scmp.eq.s32.totalorder %s25, 0
      %p272 = por %p270, %p271
      %p273 = scmp.le.s32.totalorder 1, %s19
      %p274 = scmp.lt.s32.totalorder %s19, 3
      %p275 = pnand %p273, %p274
      %p276 = pneg %p275
      // Predicated region
      $region9: #{tpu_custom_call.1} parent=5 // pred_check
        _
      $region10: #{tpu_custom_call.1} parent=5 // pred_check_branch
        %278 = sbr.rel (%p275) target = $region12
      $region11: #{tpu_custom_call.1} parent=5 // pred_region
        %s279 = ssub.s32 %s19, 1
        // Predicated region
        $region13: #{tpu_custom_call.1} parent=11 // pred_check
          %p280 = pneg %p92
        $region14: #{tpu_custom_call.1} parent=11 // pred_check_branch
          %282 = sbr.rel (%p280) target = $region16
        $region15: #{tpu_custom_call.1} parent=11 // pred_region
          _
        $region16: #{tpu_custom_call.1} parent=11 // pred_fallthru
          _
        // Predicated region
        $region17: #{tpu_custom_call.1} parent=11 // pred_check
          %p283 = pneg %p113
        $region18: #{tpu_custom_call.1} parent=11 // pred_check_branch
          %285 = sbr.rel (%p283) target = $region20
        $region19: #{tpu_custom_call.1} parent=11 // pred_region
          _
        $region20: #{tpu_custom_call.1} parent=11 // pred_fallthru
          _
        // Predicated region
        $region21: #{tpu_custom_call.1} parent=11 // pred_check
          %p286 = pneg %p134
        $region22: #{tpu_custom_call.1} parent=11 // pred_check_branch
          %288 = sbr.rel (%p286) target = $region24
        $region23: #{tpu_custom_call.1} parent=11 // pred_region
          _
        $region24: #{tpu_custom_call.1} parent=11 // pred_fallthru
          _
        // Predicated region
        $region25: #{tpu_custom_call.1} parent=11 // pred_check
          %p289 = pneg %p155
        $region26: #{tpu_custom_call.1} parent=11 // pred_check_branch
          %291 = sbr.rel (%p289) target = $region28
        $region27: #{tpu_custom_call.1} parent=11 // pred_region
          _
        $region28: #{tpu_custom_call.1} parent=11 // pred_fallthru
          _
        // Predicated region
        $region29: #{tpu_custom_call.1} parent=11 // pred_check
          %p292 = pneg %p176
        $region30: #{tpu_custom_call.1} parent=11 // pred_check_branch
          %294 = sbr.rel (%p292) target = $region32
        $region31: #{tpu_custom_call.1} parent=11 // pred_region
          _
        $region32: #{tpu_custom_call.1} parent=11 // pred_fallthru
          _
        // Predicated region
        $region33: #{tpu_custom_call.1} parent=11 // pred_check
          %p295 = pneg %p197
        $region34: #{tpu_custom_call.1} parent=11 // pred_check_branch
          %297 = sbr.rel (%p295) target = $region36
        $region35: #{tpu_custom_call.1} parent=11 // pred_region
          _
        $region36: #{tpu_custom_call.1} parent=11 // pred_fallthru
          _
        // Predicated region
        $region37: #{tpu_custom_call.1} parent=11 // pred_check
          %p298 = pneg %p218
        $region38: #{tpu_custom_call.1} parent=11 // pred_check_branch
          %300 = sbr.rel (%p298) target = $region40
        $region39: #{tpu_custom_call.1} parent=11 // pred_region
          _
        $region40: #{tpu_custom_call.1} parent=11 // pred_fallthru
          _
        // Predicated region
        $region41: #{tpu_custom_call.1} parent=11 // pred_check
          %p301 = pneg %p239
        $region42: #{tpu_custom_call.1} parent=11 // pred_check_branch
          %303 = sbr.rel (%p301) target = $region44
        $region43: #{tpu_custom_call.1} parent=11 // pred_region
          _
        $region44: #{tpu_custom_call.1} parent=11 // pred_fallthru
          _
      $region12: #{tpu_custom_call.1} parent=5 // pred_fallthru
        _
      %p304 = scmp.lt.s32.totalorder %s19, 2
      // Predicated region
      $region45: #{tpu_custom_call.1} parent=5 // pred_check
        %p305 = pneg %p304
      $region46: #{tpu_custom_call.1} parent=5 // pred_check_branch
        %307 = sbr.rel (%p305) target = $region48
      $region47: #{tpu_custom_call.1} parent=5 // pred_region
        // Predicated region
        $region49: #{tpu_custom_call.1} parent=47 // pred_check
          %p308 = pneg %p39
        $region50: #{tpu_custom_call.1} parent=47 // pred_check_branch
          %310 = sbr.rel (%p308) target = $region52
        $region51: #{tpu_custom_call.1} parent=47 // pred_region
          %s311 = smul.u32 8, %s19
          %p312 = scmp.lt.s32.totalorder %s311, 15
          %s313 = scalar_select %p312, %s311, 15
          %s314 = smul.addr %s313, 2
          %s315 = smul.addr %s314, 4
          %s316 = scalar_lea.vmem %s0, %s315
          %s317 = smul.u32 8, %s19
        $region52: #{tpu_custom_call.1} parent=47 // pred_fallthru
          _
        // Predicated region
        $region53: #{tpu_custom_call.1} parent=47 // pred_check
          %p318 = pneg %p65
        $region54: #{tpu_custom_call.1} parent=47 // pred_check_branch
          %320 = sbr.rel (%p318) target = $region56
        $region55: #{tpu_custom_call.1} parent=47 // pred_region
          %s321 = smul.u32 8, %s19
          %p322 = scmp.lt.s32.totalorder %s321, 15
          %s323 = scalar_select %p322, %s321, 15
          %s324 = smul.addr %s323, 2
          %s325 = smul.addr %s324, 8
          %s326 = scalar_lea.vmem %s1, %s325
          %s327 = smul.u32 8, %s19
        $region56: #{tpu_custom_call.1} parent=47 // pred_fallthru
          _
      $region48: #{tpu_custom_call.1} parent=5 // pred_fallthru
        _
      %p328 = scmp.le.s32.totalorder 1, %s19
      %p329 = scmp.lt.s32.totalorder %s19, 3
      %p330 = pnand %p328, %p329
      %p331 = pneg %p330
      // Predicated region
      $region57: #{tpu_custom_call.1} parent=5 // pred_check
        _
      $region58: #{tpu_custom_call.1} parent=5 // pred_check_branch
        %333 = sbr.rel (%p330) target = $region60
      $region59: #{tpu_custom_call.1} parent=5 // pred_region
        %s334 = ssub.s32 %s19, 1
        %s335 = smul.u32 8, %s24
        %p336 = scmp.lt.s32.totalorder %s335, 15
        %s337 = scalar_select %p336, %s335, 15
        %s338 = smul.addr %s337, 2
        %s339 = smul.addr %s338, 4
        %s340 = scalar_lea.vmem %s0, %s339
        %p341 = pneg %p45
        %p342 = pneg %p42
        %s343 = smul.u32 8, %s24
        %p344 = scmp.lt.s32.totalorder %s343, 15
        %s345 = scalar_select %p344, %s343, 15
        %s346 = smul.addr %s345, 2
        %s347 = smul.addr %s346, 8
        %s348 = scalar_lea.vmem %s1, %s347
        %p349 = pneg %p71
        %p350 = pneg %p68
        %p351 = pneg %p92
        %p352 = pneg %p89
        %p353 = pneg %p113
        %p354 = pneg %p110
        %p355 = pneg %p134
        %p356 = pneg %p131
        %p357 = pneg %p155
        %p358 = pneg %p152
        %p359 = pneg %p176
        %p360 = pneg %p173
        %p361 = pneg %p197
        %p362 = pneg %p194
        %p363 = pneg %p218
        %p364 = pneg %p215
        %p365 = pneg %p239
        %p366 = pneg %p236
        %p367 = pneg %p265
        %p368 = pneg %p262
        %s369 = sand.u32 %s252, 1
        %s370 = scalar_lea.sflag [#allocation3], %s369
        %s371 = sand.u32 %s252, 1
        %s372 = smul.addr %s371, 8
        %s373 = scalar_lea.vmem [#allocation2], %s372
        %s374 = smul.u32 8, %s24
        %p375 = scmp.lt.s32.totalorder %s374, 15
        %s376 = scalar_select %p375, %s374, 15
        %s377 = smul.addr %s376, 2
        %s378 = smul.addr %s377, 4
        %s379 = scalar_lea.vmem %s0, %s378
        %s380 = smul.u32 8, %s24
        %s381 = smul.u32 8, %s24
        %p382 = scmp.lt.s32.totalorder %s381, 15
        %s383 = scalar_select %p382, %s381, 15
        %s384 = smul.addr %s383, 2
        %s385 = smul.addr %s384, 8
        %s386 = scalar_lea.vmem %s1, %s385
        %s387 = smul.u32 8, %s24
        %v388 = vld [vmem:[%s379] sm:$0xf]
        %v389 = vld [vmem:[%s379 + $0x4] sm:$0xf]
        %v390 = vld [vmem:[%s379 + $0x8] sm:$0xf]
        %v391 = vld [vmem:[%s379 + $0xc] sm:$0xf]
        %v392 = vld [vmem:[%s379 + $0x10] sm:$0xf]
        %v393 = vld [vmem:[%s379 + $0x14] sm:$0xf]
        %v394 = vld [vmem:[%s379 + $0x18] sm:$0xf]
        %v395 = vld [vmem:[%s379 + $0x1c] sm:$0xf]
        %v396 = vld [vmem:[%s379 + $0x20] sm:$0xf]
        %v397 = vld [vmem:[%s379 + $0x24] sm:$0xf]
        %v398 = vld [vmem:[%s379 + $0x28] sm:$0xf]
        %v399 = vld [vmem:[%s379 + $0x2c] sm:$0xf]
        %v400 = vld [vmem:[%s379 + $0x30] sm:$0xf]
        %v401 = vld [vmem:[%s379 + $0x34] sm:$0xf]
        %v402 = vld [vmem:[%s379 + $0x38] sm:$0xf]
        %v403 = vld [vmem:[%s379 + $0x3c] sm:$0xf]
        %v404 = vunpack.c.l.bf16 %v388
        %v405 = vunpack.c.l.bf16 %v389
        %v406 = vunpack.c.l.bf16 %v390
        %v407 = vunpack.c.l.bf16 %v391
        %v408 = vunpack.c.l.bf16 %v392
        %v409 = vunpack.c.l.bf16 %v393
        %v410 = vunpack.c.l.bf16 %v394
        %v411 = vunpack.c.l.bf16 %v395
        %v412 = vunpack.c.l.bf16 %v396
        %v413 = vunpack.c.l.bf16 %v397
        %v414 = vunpack.c.l.bf16 %v398
        %v415 = vunpack.c.l.bf16 %v399
        %v416 = vunpack.c.l.bf16 %v400
        %v417 = vunpack.c.l.bf16 %v401
        %v418 = vunpack.c.l.bf16 %v402
        %v419 = vunpack.c.l.bf16 %v403
        %v420 = vld [vmem:[%s386] sm:$0xff]
        %v421 = vld [vmem:[%s386 + $0x8] sm:$0xff]
        %v422 = vld [vmem:[%s386 + $0x10] sm:$0xff]
        %v423 = vld [vmem:[%s386 + $0x18] sm:$0xff]
        %v424 = vld [vmem:[%s386 + $0x20] sm:$0xff]
        %v425 = vld [vmem:[%s386 + $0x28] sm:$0xff]
        %v426 = vld [vmem:[%s386 + $0x30] sm:$0xff]
        %v427 = vld [vmem:[%s386 + $0x38] sm:$0xff]
        %v428 = vld [vmem:[%s386 + $0x40] sm:$0xff]
        %v429 = vld [vmem:[%s386 + $0x48] sm:$0xff]
        %v430 = vld [vmem:[%s386 + $0x50] sm:$0xff]
        %v431 = vld [vmem:[%s386 + $0x58] sm:$0xff]
        %v432 = vld [vmem:[%s386 + $0x60] sm:$0xff]
        %v433 = vld [vmem:[%s386 + $0x68] sm:$0xff]
        %v434 = vld [vmem:[%s386 + $0x70] sm:$0xff]
        %v435 = vld [vmem:[%s386 + $0x78] sm:$0xff]
        %vm436 = vcmask 130048
        %v438 = vsel %vm436, %v404, 0
        %v441 = vsel %vm436, %v405, 0
        %443 = vmatpush.msra.mxu0 0.0
        %444 = vmatpush.msra.mxu0 0.0
        %445 = vmatpush.msra.mxu0 0.0
        %446 = vmatpush.msra.mxu0 0.0
        %447 = vmatpush.msra.mxu0 0.0
        %448 = vmatpush.msra.mxu0 0.0
        %449 = vmatpush.msra.mxu0 0.0
        %450 = vmatpush.msra.mxu0 0.0
        %451 = vmatpush.msra.mxu0 0.0
        %452 = vmatpush.msra.mxu0 0.0
        %453 = vmatpush.msra.mxu0 0.0
        %454 = vmatpush.msra.mxu0 0.0
        %455 = vmatpush.msra.mxu0 0.0
        %456 = vmatpush.msra.mxu0 0.0
        %457 = vmatpush.msra.mxu0 %v421
        %458 = vmatpush.msra.mxu0 %v420
        %459 = vmatmul.f32.gmra.mxu0 %v438
        %v460 = vpop.f32.mrf.mxu0
        %v461 = vadd.f32 0.0, %v460
        %462 = vmatmul.f32.gmra.mxu0 %v441
        %v463 = vpop.f32.mrf.mxu0
        %v464 = vadd.f32 0.0, %v463
        %465 = vdwg.mxu0
        %v467 = vsel %vm436, %v406, 0
        %v470 = vsel %vm436, %v407, 0
        %472 = vmatpush.msra.mxu0 0.0
        %473 = vmatpush.msra.mxu0 0.0
        %474 = vmatpush.msra.mxu0 0.0
        %475 = vmatpush.msra.mxu0 0.0
        %476 = vmatpush.msra.mxu0 0.0
        %477 = vmatpush.msra.mxu0 0.0
        %478 = vmatpush.msra.mxu0 0.0
        %479 = vmatpush.msra.mxu0 0.0
        %480 = vmatpush.msra.mxu0 0.0
        %481 = vmatpush.msra.mxu0 0.0
        %482 = vmatpush.msra.mxu0 0.0
        %483 = vmatpush.msra.mxu0 0.0
        %484 = vmatpush.msra.mxu0 0.0
        %485 = vmatpush.msra.mxu0 0.0
        %486 = vmatpush.msra.mxu0 %v423
        %487 = vmatpush.msra.mxu0 %v422
        %488 = vmatmul.f32.gmra.mxu0 %v467
        %v489 = vpop.f32.mrf.mxu0
        %v490 = vadd.f32 0.0, %v489
        %491 = vmatmul.f32.gmra.mxu0 %v470
        %v492 = vpop.f32.mrf.mxu0
        %v493 = vadd.f32 0.0, %v492
        %494 = vdwg.mxu0
        %v496 = vsel %vm436, %v408, 0
        %v499 = vsel %vm436, %v409, 0
        %501 = vmatpush.msra.mxu0 0.0
        %502 = vmatpush.msra.mxu0 0.0
        %503 = vmatpush.msra.mxu0 0.0
        %504 = vmatpush.msra.mxu0 0.0
        %505 = vmatpush.msra.mxu0 0.0
        %506 = vmatpush.msra.mxu0 0.0
        %507 = vmatpush.msra.mxu0 0.0
        %508 = vmatpush.msra.mxu0 0.0
        %509 = vmatpush.msra.mxu0 0.0
        %510 = vmatpush.msra.mxu0 0.0
        %511 = vmatpush.msra.mxu0 0.0
        %512 = vmatpush.msra.mxu0 0.0
        %513 = vmatpush.msra.mxu0 0.0
        %514 = vmatpush.msra.mxu0 0.0
        %515 = vmatpush.msra.mxu0 %v425
        %516 = vmatpush.msra.mxu0 %v424
        %517 = vmatmul.f32.gmra.mxu0 %v496
        %v518 = vpop.f32.mrf.mxu0
        %v519 = vadd.f32 0.0, %v518
        %520 = vmatmul.f32.gmra.mxu0 %v499
        %v521 = vpop.f32.mrf.mxu0
        %v522 = vadd.f32 0.0, %v521
        %523 = vdwg.mxu0
        %v525 = vsel %vm436, %v410, 0
        %v528 = vsel %vm436, %v411, 0
        %530 = vmatpush.msra.mxu0 0.0
        %531 = vmatpush.msra.mxu0 0.0
        %532 = vmatpush.msra.mxu0 0.0
        %533 = vmatpush.msra.mxu0 0.0
        %534 = vmatpush.msra.mxu0 0.0
        %535 = vmatpush.msra.mxu0 0.0
        %536 = vmatpush.msra.mxu0 0.0
        %537 = vmatpush.msra.mxu0 0.0
        %538 = vmatpush.msra.mxu0 0.0
        %539 = vmatpush.msra.mxu0 0.0
        %540 = vmatpush.msra.mxu0 0.0
        %541 = vmatpush.msra.mxu0 0.0
        %542 = vmatpush.msra.mxu0 0.0
        %543 = vmatpush.msra.mxu0 0.0
        %544 = vmatpush.msra.mxu0 %v427
        %545 = vmatpush.msra.mxu0 %v426
        %546 = vmatmul.f32.gmra.mxu0 %v525
        %v547 = vpop.f32.mrf.mxu0
        %v548 = vadd.f32 0.0, %v547
        %549 = vmatmul.f32.gmra.mxu0 %v528
        %v550 = vpop.f32.mrf.mxu0
        %v551 = vadd.f32 0.0, %v550
        %552 = vdwg.mxu0
        %v554 = vsel %vm436, %v412, 0
        %v557 = vsel %vm436, %v413, 0
        %559 = vmatpush.msra.mxu0 0.0
        %560 = vmatpush.msra.mxu0 0.0
        %561 = vmatpush.msra.mxu0 0.0
        %562 = vmatpush.msra.mxu0 0.0
        %563 = vmatpush.msra.mxu0 0.0
        %564 = vmatpush.msra.mxu0 0.0
        %565 = vmatpush.msra.mxu0 0.0
        %566 = vmatpush.msra.mxu0 0.0
        %567 = vmatpush.msra.mxu0 0.0
        %568 = vmatpush.msra.mxu0 0.0
        %569 = vmatpush.msra.mxu0 0.0
        %570 = vmatpush.msra.mxu0 0.0
        %571 = vmatpush.msra.mxu0 0.0
        %572 = vmatpush.msra.mxu0 0.0
        %573 = vmatpush.msra.mxu0 %v429
        %574 = vmatpush.msra.mxu0 %v428
        %575 = vmatmul.f32.gmra.mxu0 %v554
        %v576 = vpop.f32.mrf.mxu0
        %v577 = vadd.f32 0.0, %v576
        %578 = vmatmul.f32.gmra.mxu0 %v557
        %v579 = vpop.f32.mrf.mxu0
        %v580 = vadd.f32 0.0, %v579
        %581 = vdwg.mxu0
        %v583 = vsel %vm436, %v414, 0
        %v586 = vsel %vm436, %v415, 0
        %588 = vmatpush.msra.mxu0 0.0
        %589 = vmatpush.msra.mxu0 0.0
        %590 = vmatpush.msra.mxu0 0.0
        %591 = vmatpush.msra.mxu0 0.0
        %592 = vmatpush.msra.mxu0 0.0
        %593 = vmatpush.msra.mxu0 0.0
        %594 = vmatpush.msra.mxu0 0.0
        %595 = vmatpush.msra.mxu0 0.0
        %596 = vmatpush.msra.mxu0 0.0
        %597 = vmatpush.msra.mxu0 0.0
        %598 = vmatpush.msra.mxu0 0.0
        %599 = vmatpush.msra.mxu0 0.0
        %600 = vmatpush.msra.mxu0 0.0
        %601 = vmatpush.msra.mxu0 0.0
        %602 = vmatpush.msra.mxu0 %v431
        %603 = vmatpush.msra.mxu0 %v430
        %604 = vmatmul.f32.gmra.mxu0 %v583
        %v605 = vpop.f32.mrf.mxu0
        %v606 = vadd.f32 0.0, %v605
        %607 = vmatmul.f32.gmra.mxu0 %v586
        %v608 = vpop.f32.mrf.mxu0
        %v609 = vadd.f32 0.0, %v608
        %610 = vdwg.mxu0
        %v612 = vsel %vm436, %v416, 0
        %v615 = vsel %vm436, %v417, 0
        %617 = vmatpush.msra.mxu0 0.0
        %618 = vmatpush.msra.mxu0 0.0
        %619 = vmatpush.msra.mxu0 0.0
        %620 = vmatpush.msra.mxu0 0.0
        %621 = vmatpush.msra.mxu0 0.0
        %622 = vmatpush.msra.mxu0 0.0
        %623 = vmatpush.msra.mxu0 0.0
        %624 = vmatpush.msra.mxu0 0.0
        %625 = vmatpush.msra.mxu0 0.0
        %626 = vmatpush.msra.mxu0 0.0
        %627 = vmatpush.msra.mxu0 0.0
        %628 = vmatpush.msra.mxu0 0.0
        %629 = vmatpush.msra.mxu0 0.0
        %630 = vmatpush.msra.mxu0 0.0
        %631 = vmatpush.msra.mxu0 %v433
        %632 = vmatpush.msra.mxu0 %v432
        %633 = vmatmul.f32.gmra.mxu0 %v612
        %v634 = vpop.f32.mrf.mxu0
        %v635 = vadd.f32 0.0, %v634
        %636 = vmatmul.f32.gmra.mxu0 %v615
        %v637 = vpop.f32.mrf.mxu0
        %v638 = vadd.f32 0.0, %v637
        %639 = vdwg.mxu0
        %v641 = vsel %vm436, %v418, 0
        %v644 = vsel %vm436, %v419, 0
        %646 = vmatpush.msra.mxu0 0.0
        %647 = vmatpush.msra.mxu0 0.0
        %648 = vmatpush.msra.mxu0 0.0
        %649 = vmatpush.msra.mxu0 0.0
        %650 = vmatpush.msra.mxu0 0.0
        %651 = vmatpush.msra.mxu0 0.0
        %652 = vmatpush.msra.mxu0 0.0
        %653 = vmatpush.msra.mxu0 0.0
        %654 = vmatpush.msra.mxu0 0.0
        %655 = vmatpush.msra.mxu0 0.0
        %656 = vmatpush.msra.mxu0 0.0
        %657 = vmatpush.msra.mxu0 0.0
        %658 = vmatpush.msra.mxu0 0.0
        %659 = vmatpush.msra.mxu0 0.0
        %660 = vmatpush.msra.mxu0 %v435
        %661 = vmatpush.msra.mxu0 %v434
        %662 = vmatmul.f32.gmra.mxu0 %v641
        %v663 = vpop.f32.mrf.mxu0
        %v664 = vadd.f32 0.0, %v663
        %665 = vmatmul.f32.gmra.mxu0 %v644
        %v666 = vpop.f32.mrf.mxu0
        %v667 = vadd.f32 0.0, %v666
        %668 = vdwg.mxu0
        %v669 = vld [vmem:[%s2] sm:$0xff]
        %v670 = vld [vmem:[%s3] sm:$0x1]
        %v672 = vperm.slane %v670, 0
        %vm674 = vcmask 64512
        %v676 = vsel %vm674, %v461, 0
        %v679 = vsel %vm674, %v464, 0
        %v682 = vsel %vm674, %v490, 0
        %v685 = vsel %vm674, %v493, 0
        %v688 = vsel %vm674, %v519, 0
        %v691 = vsel %vm674, %v522, 0
        %v694 = vsel %vm674, %v548, 0
        %v697 = vsel %vm674, %v551, 0
        %v700 = vsel %vm674, %v577, 0
        %v703 = vsel %vm674, %v580, 0
        %v706 = vsel %vm674, %v606, 0
        %v709 = vsel %vm674, %v609, 0
        %v712 = vsel %vm674, %v635, 0
        %v715 = vsel %vm674, %v638, 0
        %v718 = vsel %vm674, %v664, 0
        %v721 = vsel %vm674, %v667, 0
        %723 = vmatpush.msra.mxu0 0.0
        %724 = vmatpush.msra.mxu0 0.0
        %725 = vmatpush.msra.mxu0 0.0
        %726 = vmatpush.msra.mxu0 0.0
        %727 = vmatpush.msra.mxu0 0.0
        %728 = vmatpush.msra.mxu0 0.0
        %729 = vmatpush.msra.mxu0 0.0
        %730 = vmatpush.msra.mxu0 0.0
        %731 = vmatpush.msra.mxu0 0.0
        %732 = vmatpush.msra.mxu0 0.0
        %733 = vmatpush.msra.mxu0 0.0
        %734 = vmatpush.msra.mxu0 0.0
        %735 = vmatpush.msra.mxu0 0.0
        %736 = vmatpush.msra.mxu0 0.0
        %737 = vmatpush.msra.mxu0 0.0
        %738 = vmatpush.msra.mxu0 %v669
        %739 = vmatmul.f32.gmra.mxu0 %v676
        %v740 = vpop.f32.mrf.mxu0
        %v741 = vadd.f32 %v672, %v740
        %742 = vmatmul.f32.gmra.mxu0 %v679
        %v743 = vpop.f32.mrf.mxu0
        %v744 = vadd.f32 %v672, %v743
        %745 = vmatmul.f32.gmra.mxu0 %v682
        %v746 = vpop.f32.mrf.mxu0
        %v747 = vadd.f32 %v672, %v746
        %748 = vmatmul.f32.gmra.mxu0 %v685
        %v749 = vpop.f32.mrf.mxu0
        %v750 = vadd.f32 %v672, %v749
        %751 = vmatmul.f32.gmra.mxu0 %v688
        %v752 = vpop.f32.mrf.mxu0
        %v753 = vadd.f32 %v672, %v752
        %754 = vmatmul.f32.gmra.mxu0 %v691
        %v755 = vpop.f32.mrf.mxu0
        %v756 = vadd.f32 %v672, %v755
        %757 = vmatmul.f32.gmra.mxu0 %v694
        %v758 = vpop.f32.mrf.mxu0
        %v759 = vadd.f32 %v672, %v758
        %760 = vmatmul.f32.gmra.mxu0 %v697
        %v761 = vpop.f32.mrf.mxu0
        %v762 = vadd.f32 %v672, %v761
        %763 = vmatmul.f32.gmra.mxu0 %v700
        %v764 = vpop.f32.mrf.mxu0
        %v765 = vadd.f32 %v672, %v764
        %766 = vmatmul.f32.gmra.mxu0 %v703
        %v767 = vpop.f32.mrf.mxu0
        %v768 = vadd.f32 %v672, %v767
        %769 = vmatmul.f32.gmra.mxu0 %v706
        %v770 = vpop.f32.mrf.mxu0
        %v771 = vadd.f32 %v672, %v770
        %772 = vmatmul.f32.gmra.mxu0 %v709
        %v773 = vpop.f32.mrf.mxu0
        %v774 = vadd.f32 %v672, %v773
        %775 = vmatmul.f32.gmra.mxu0 %v712
        %v776 = vpop.f32.mrf.mxu0
        %v777 = vadd.f32 %v672, %v776
        %778 = vmatmul.f32.gmra.mxu0 %v715
        %v779 = vpop.f32.mrf.mxu0
        %v780 = vadd.f32 %v672, %v779
        %781 = vmatmul.f32.gmra.mxu0 %v718
        %v782 = vpop.f32.mrf.mxu0
        %v783 = vadd.f32 %v672, %v782
        %784 = vmatmul.f32.gmra.mxu0 %v721
        %v785 = vpop.f32.mrf.mxu0
        %v786 = vadd.f32 %v672, %v785
        %787 = vdwg.mxu0
        %v788 = vmax.f32 %v741, 0.0
        %v789 = vmax.f32 %v744, 0.0
        %v790 = vmax.f32 %v747, 0.0
        %v791 = vmax.f32 %v750, 0.0
        %v792 = vmax.f32 %v753, 0.0
        %v793 = vmax.f32 %v756, 0.0
        %v794 = vmax.f32 %v759, 0.0
        %v795 = vmax.f32 %v762, 0.0
        %v796 = vmax.f32 %v765, 0.0
        %v797 = vmax.f32 %v768, 0.0
        %v798 = vmax.f32 %v771, 0.0
        %v799 = vmax.f32 %v774, 0.0
        %v800 = vmax.f32 %v777, 0.0
        %v801 = vmax.f32 %v780, 0.0
        %v802 = vmax.f32 %v783, 0.0
        %v803 = vmax.f32 %v786, 0.0
        %v804 = vld [vmem:[%s4] sm:$0xff]
        %v805 = vld [vmem:[%s4 + $0x8] sm:$0xff]
        %v806 = vld [vmem:[%s4 + $0x10] sm:$0xff]
        %v807 = vld [vmem:[%s4 + $0x18] sm:$0xff]
        %vm808 = vcmask 261120
        %v810 = vsel %vm808, %v788, 0
        %v813 = vsel %vm808, %v789, 0
        %v816 = vsel %vm808, %v790, 0
        %v819 = vsel %vm808, %v791, 0
        %v822 = vsel %vm808, %v792, 0
        %v825 = vsel %vm808, %v793, 0
        %v828 = vsel %vm808, %v794, 0
        %v831 = vsel %vm808, %v795, 0
        %v834 = vsel %vm808, %v796, 0
        %v837 = vsel %vm808, %v797, 0
        %v840 = vsel %vm808, %v798, 0
        %v843 = vsel %vm808, %v799, 0
        %v846 = vsel %vm808, %v800, 0
        %v849 = vsel %vm808, %v801, 0
        %v852 = vsel %vm808, %v802, 0
        %v855 = vsel %vm808, %v803, 0
        %857 = vmatpush.msra.mxu0 0.0
        %858 = vmatpush.msra.mxu0 0.0
        %859 = vmatpush.msra.mxu0 0.0
        %860 = vmatpush.msra.mxu0 0.0
        %861 = vmatpush.msra.mxu0 0.0
        %862 = vmatpush.msra.mxu0 0.0
        %863 = vmatpush.msra.mxu0 0.0
        %864 = vmatpush.msra.mxu0 0.0
        %865 = vmatpush.msra.mxu0 0.0
        %866 = vmatpush.msra.mxu0 0.0
        %867 = vmatpush.msra.mxu0 0.0
        %868 = vmatpush.msra.mxu0 0.0
        %869 = vmatpush.msra.mxu0 %v807
        %870 = vmatpush.msra.mxu0 %v806
        %871 = vmatpush.msra.mxu0 %v805
        %872 = vmatpush.msra.mxu0 %v804
        %873 = vmatmul.f32.gmra.mxu0 %v810
        %v874 = vpop.f32.mrf.mxu0
        %v875 = vadd.f32 0.0, %v874
        %876 = vmatmul.f32.gmra.mxu0 %v813
        %v877 = vpop.f32.mrf.mxu0
        %v878 = vadd.f32 0.0, %v877
        %879 = vmatmul.f32.gmra.mxu0 %v816
        %v880 = vpop.f32.mrf.mxu0
        %v881 = vadd.f32 0.0, %v880
        %882 = vmatmul.f32.gmra.mxu0 %v819
        %v883 = vpop.f32.mrf.mxu0
        %v884 = vadd.f32 0.0, %v883
        %885 = vmatmul.f32.gmra.mxu0 %v822
        %v886 = vpop.f32.mrf.mxu0
        %v887 = vadd.f32 0.0, %v886
        %888 = vmatmul.f32.gmra.mxu0 %v825
        %v889 = vpop.f32.mrf.mxu0
        %v890 = vadd.f32 0.0, %v889
        %891 = vmatmul.f32.gmra.mxu0 %v828
        %v892 = vpop.f32.mrf.mxu0
        %v893 = vadd.f32 0.0, %v892
        %894 = vmatmul.f32.gmra.mxu0 %v831
        %v895 = vpop.f32.mrf.mxu0
        %v896 = vadd.f32 0.0, %v895
        %897 = vmatmul.f32.gmra.mxu0 %v834
        %v898 = vpop.f32.mrf.mxu0
        %v899 = vadd.f32 0.0, %v898
        %900 = vmatmul.f32.gmra.mxu0 %v837
        %v901 = vpop.f32.mrf.mxu0
        %v902 = vadd.f32 0.0, %v901
        %903 = vmatmul.f32.gmra.mxu0 %v840
        %v904 = vpop.f32.mrf.mxu0
        %v905 = vadd.f32 0.0, %v904
        %906 = vmatmul.f32.gmra.mxu0 %v843
        %v907 = vpop.f32.mrf.mxu0
        %v908 = vadd.f32 0.0, %v907
        %909 = vmatmul.f32.gmra.mxu0 %v846
        %v910 = vpop.f32.mrf.mxu0
        %v911 = vadd.f32 0.0, %v910
        %912 = vmatmul.f32.gmra.mxu0 %v849
        %v913 = vpop.f32.mrf.mxu0
        %v914 = vadd.f32 0.0, %v913
        %915 = vmatmul.f32.gmra.mxu0 %v852
        %v916 = vpop.f32.mrf.mxu0
        %v917 = vadd.f32 0.0, %v916
        %918 = vmatmul.f32.gmra.mxu0 %v855
        %v919 = vpop.f32.mrf.mxu0
        %v920 = vadd.f32 0.0, %v919
        %921 = vdwg.mxu0
        %922 = vmatpush.msra.mxu0 0.0
        %923 = vmatpush.msra.mxu0 0.0
        %924 = vmatpush.msra.mxu0 0.0
        %925 = vmatpush.msra.mxu0 0.0
        %926 = vmatpush.msra.mxu0 0.0
        %927 = vmatpush.msra.mxu0 0.0
        %928 = vmatpush.msra.mxu0 0.0
        %929 = vmatpush.msra.mxu0 0.0
        %930 = vmatpush.msra.mxu0 0.0
        %931 = vmatpush.msra.mxu0 0.0
        %932 = vmatpush.msra.mxu0 0.0
        %933 = vmatpush.msra.mxu0 0.0
        %934 = vmatpush.msra.mxu0 0.0
        %935 = vmatpush.msra.mxu0 0.0
        %936 = vmatpush.msra.mxu0 %v878
        %937 = vmatpush.msra.mxu0 %v875
        %938 = vmatmul.f32.gmra.mxu0 %v438
        %v939 = vpop.f32.mrf.mxu0
        %v940 = vadd.f32 0.0, %v939
        %941 = vmatmul.f32.gmra.mxu0 %v441
        %v942 = vpop.f32.mrf.mxu0
        %v943 = vadd.f32 0.0, %v942
        %944 = vdwg.mxu0
        %945 = vmatpush.msra.mxu0 0.0
        %946 = vmatpush.msra.mxu0 0.0
        %947 = vmatpush.msra.mxu0 0.0
        %948 = vmatpush.msra.mxu0 0.0
        %949 = vmatpush.msra.mxu0 0.0
        %950 = vmatpush.msra.mxu0 0.0
        %951 = vmatpush.msra.mxu0 0.0
        %952 = vmatpush.msra.mxu0 0.0
        %953 = vmatpush.msra.mxu0 0.0
        %954 = vmatpush.msra.mxu0 0.0
        %955 = vmatpush.msra.mxu0 0.0
        %956 = vmatpush.msra.mxu0 0.0
        %957 = vmatpush.msra.mxu0 0.0
        %958 = vmatpush.msra.mxu0 0.0
        %959 = vmatpush.msra.mxu0 %v884
        %960 = vmatpush.msra.mxu0 %v881
        %961 = vmatmul.f32.gmra.mxu0 %v467
        %v962 = vpop.f32.mrf.mxu0
        %v963 = vadd.f32 0.0, %v962
        %964 = vmatmul.f32.gmra.mxu0 %v470
        %v965 = vpop.f32.mrf.mxu0
        %v966 = vadd.f32 0.0, %v965
        %967 = vdwg.mxu0
        %968 = vmatpush.msra.mxu0 0.0
        %969 = vmatpush.msra.mxu0 0.0
        %970 = vmatpush.msra.mxu0 0.0
        %971 = vmatpush.msra.mxu0 0.0
        %972 = vmatpush.msra.mxu0 0.0
        %973 = vmatpush.msra.mxu0 0.0
        %974 = vmatpush.msra.mxu0 0.0
        %975 = vmatpush.msra.mxu0 0.0
        %976 = vmatpush.msra.mxu0 0.0
        %977 = vmatpush.msra.mxu0 0.0
        %978 = vmatpush.msra.mxu0 0.0
        %979 = vmatpush.msra.mxu0 0.0
        %980 = vmatpush.msra.mxu0 0.0
        %981 = vmatpush.msra.mxu0 0.0
        %982 = vmatpush.msra.mxu0 %v890
        %983 = vmatpush.msra.mxu0 %v887
        %984 = vmatmul.f32.gmra.mxu0 %v496
        %v985 = vpop.f32.mrf.mxu0
        %v986 = vadd.f32 0.0, %v985
        %987 = vmatmul.f32.gmra.mxu0 %v499
        %v988 = vpop.f32.mrf.mxu0
        %v989 = vadd.f32 0.0, %v988
        %990 = vdwg.mxu0
        %991 = vmatpush.msra.mxu0 0.0
        %992 = vmatpush.msra.mxu0 0.0
        %993 = vmatpush.msra.mxu0 0.0
        %994 = vmatpush.msra.mxu0 0.0
        %995 = vmatpush.msra.mxu0 0.0
        %996 = vmatpush.msra.mxu0 0.0
        %997 = vmatpush.msra.mxu0 0.0
        %998 = vmatpush.msra.mxu0 0.0
        %999 = vmatpush.msra.mxu0 0.0
        %1000 = vmatpush.msra.mxu0 0.0
        %1001 = vmatpush.msra.mxu0 0.0
        %1002 = vmatpush.msra.mxu0 0.0
        %1003 = vmatpush.msra.mxu0 0.0
        %1004 = vmatpush.msra.mxu0 0.0
        %1005 = vmatpush.msra.mxu0 %v896
        %1006 = vmatpush.msra.mxu0 %v893
        %1007 = vmatmul.f32.gmra.mxu0 %v525
        %v1008 = vpop.f32.mrf.mxu0
        %v1009 = vadd.f32 0.0, %v1008
        %1010 = vmatmul.f32.gmra.mxu0 %v528
        %v1011 = vpop.f32.mrf.mxu0
        %v1012 = vadd.f32 0.0, %v1011
        %1013 = vdwg.mxu0
        %1014 = vmatpush.msra.mxu0 0.0
        %1015 = vmatpush.msra.mxu0 0.0
        %1016 = vmatpush.msra.mxu0 0.0
        %1017 = vmatpush.msra.mxu0 0.0
        %1018 = vmatpush.msra.mxu0 0.0
        %1019 = vmatpush.msra.mxu0 0.0
        %1020 = vmatpush.msra.mxu0 0.0
        %1021 = vmatpush.msra.mxu0 0.0
        %1022 = vmatpush.msra.mxu0 0.0
        %1023 = vmatpush.msra.mxu0 0.0
        %1024 = vmatpush.msra.mxu0 0.0
        %1025 = vmatpush.msra.mxu0 0.0
        %1026 = vmatpush.msra.mxu0 0.0
        %1027 = vmatpush.msra.mxu0 0.0
        %1028 = vmatpush.msra.mxu0 %v902
        %1029 = vmatpush.msra.mxu0 %v899
        %1030 = vmatmul.f32.gmra.mxu0 %v554
        %v1031 = vpop.f32.mrf.mxu0
        %v1032 = vadd.f32 0.0, %v1031
        %1033 = vmatmul.f32.gmra.mxu0 %v557
        %v1034 = vpop.f32.mrf.mxu0
        %v1035 = vadd.f32 0.0, %v1034
        %1036 = vdwg.mxu0
        %1037 = vmatpush.msra.mxu0 0.0
        %1038 = vmatpush.msra.mxu0 0.0
        %1039 = vmatpush.msra.mxu0 0.0
        %1040 = vmatpush.msra.mxu0 0.0
        %1041 = vmatpush.msra.mxu0 0.0
        %1042 = vmatpush.msra.mxu0 0.0
        %1043 = vmatpush.msra.mxu0 0.0
        %1044 = vmatpush.msra.mxu0 0.0
        %1045 = vmatpush.msra.mxu0 0.0
        %1046 = vmatpush.msra.mxu0 0.0
        %1047 = vmatpush.msra.mxu0 0.0
        %1048 = vmatpush.msra.mxu0 0.0
        %1049 = vmatpush.msra.mxu0 0.0
        %1050 = vmatpush.msra.mxu0 0.0
        %1051 = vmatpush.msra.mxu0 %v908
        %1052 = vmatpush.msra.mxu0 %v905
        %1053 = vmatmul.f32.gmra.mxu0 %v583
        %v1054 = vpop.f32.mrf.mxu0
        %v1055 = vadd.f32 0.0, %v1054
        %1056 = vmatmul.f32.gmra.mxu0 %v586
        %v1057 = vpop.f32.mrf.mxu0
        %v1058 = vadd.f32 0.0, %v1057
        %1059 = vdwg.mxu0
        %1060 = vmatpush.msra.mxu0 0.0
        %1061 = vmatpush.msra.mxu0 0.0
        %1062 = vmatpush.msra.mxu0 0.0
        %1063 = vmatpush.msra.mxu0 0.0
        %1064 = vmatpush.msra.mxu0 0.0
        %1065 = vmatpush.msra.mxu0 0.0
        %1066 = vmatpush.msra.mxu0 0.0
        %1067 = vmatpush.msra.mxu0 0.0
        %1068 = vmatpush.msra.mxu0 0.0
        %1069 = vmatpush.msra.mxu0 0.0
        %1070 = vmatpush.msra.mxu0 0.0
        %1071 = vmatpush.msra.mxu0 0.0
        %1072 = vmatpush.msra.mxu0 0.0
        %1073 = vmatpush.msra.mxu0 0.0
        %1074 = vmatpush.msra.mxu0 %v914
        %1075 = vmatpush.msra.mxu0 %v911
        %1076 = vmatmul.f32.gmra.mxu0 %v612
        %v1077 = vpop.f32.mrf.mxu0
        %v1078 = vadd.f32 0.0, %v1077
        %1079 = vmatmul.f32.gmra.mxu0 %v615
        %v1080 = vpop.f32.mrf.mxu0
        %v1081 = vadd.f32 0.0, %v1080
        %1082 = vdwg.mxu0
        %1083 = vmatpush.msra.mxu0 0.0
        %1084 = vmatpush.msra.mxu0 0.0
        %1085 = vmatpush.msra.mxu0 0.0
        %1086 = vmatpush.msra.mxu0 0.0
        %1087 = vmatpush.msra.mxu0 0.0
        %1088 = vmatpush.msra.mxu0 0.0
        %1089 = vmatpush.msra.mxu0 0.0
        %1090 = vmatpush.msra.mxu0 0.0
        %1091 = vmatpush.msra.mxu0 0.0
        %1092 = vmatpush.msra.mxu0 0.0
        %1093 = vmatpush.msra.mxu0 0.0
        %1094 = vmatpush.msra.mxu0 0.0
        %1095 = vmatpush.msra.mxu0 0.0
        %1096 = vmatpush.msra.mxu0 0.0
        %1097 = vmatpush.msra.mxu0 %v920
        %1098 = vmatpush.msra.mxu0 %v917
        %1099 = vmatmul.f32.gmra.mxu0 %v641
        %v1100 = vpop.f32.mrf.mxu0
        %v1101 = vadd.f32 0.0, %v1100
        %1102 = vmatmul.f32.gmra.mxu0 %v644
        %v1103 = vpop.f32.mrf.mxu0
        %v1104 = vadd.f32 0.0, %v1103
        %1105 = vdwg.mxu0
        %v1106 = vld [vmem:[%s5] sm:$0x1]
        %v1108 = vperm.slane %v1106, 0
        %v1110 = vadd.f32 %v940, %v1108
        %v1111 = vadd.f32 %v943, %v1108
        %v1112 = vadd.f32 %v963, %v1108
        %v1113 = vadd.f32 %v966, %v1108
        %v1114 = vadd.f32 %v986, %v1108
        %v1115 = vadd.f32 %v989, %v1108
        %v1116 = vadd.f32 %v1009, %v1108
        %v1117 = vadd.f32 %v1012, %v1108
        %v1118 = vadd.f32 %v1032, %v1108
        %v1119 = vadd.f32 %v1035, %v1108
        %v1120 = vadd.f32 %v1055, %v1108
        %v1121 = vadd.f32 %v1058, %v1108
        %v1122 = vadd.f32 %v1078, %v1108
        %v1123 = vadd.f32 %v1081, %v1108
        %v1124 = vadd.f32 %v1101, %v1108
        %v1125 = vadd.f32 %v1104, %v1108
        %v1126 = vmax.f32 %v1110, 0.0
        %v1127 = vmax.f32 %v1111, 0.0
        %v1128 = vmax.f32 %v1112, 0.0
        %v1129 = vmax.f32 %v1113, 0.0
        %v1130 = vmax.f32 %v1114, 0.0
        %v1131 = vmax.f32 %v1115, 0.0
        %v1132 = vmax.f32 %v1116, 0.0
        %v1133 = vmax.f32 %v1117, 0.0
        %v1134 = vmax.f32 %v1118, 0.0
        %v1135 = vmax.f32 %v1119, 0.0
        %v1136 = vmax.f32 %v1120, 0.0
        %v1137 = vmax.f32 %v1121, 0.0
        %v1138 = vmax.f32 %v1122, 0.0
        %v1139 = vmax.f32 %v1123, 0.0
        %v1140 = vmax.f32 %v1124, 0.0
        %v1141 = vmax.f32 %v1125, 0.0
        %v1142 = vsel %vm808, %v1126, -inf
        %v1143 = vsel %vm808, %v1127, -inf
        %v1144 = vmax.f32 %v1142, %v1143
        %v1145 = vrot.slane %v1144, 4
        %v1146 = vmax.f32 %v1144, %v1145
        %v1147 = vrot.slane %v1146, 2
        %v1148 = vmax.f32 %v1146, %v1147
        %v1149 = vrot.slane %v1148, 1
        %v1150 = vmax.f32 %v1148, %v1149
        %v1151 = vsel %vm808, %v1128, -inf
        %v1152 = vsel %vm808, %v1129, -inf
        %v1153 = vmax.f32 %v1151, %v1152
        %v1154 = vrot.slane %v1153, 4
        %v1155 = vmax.f32 %v1153, %v1154
        %v1156 = vrot.slane %v1155, 2
        %v1157 = vmax.f32 %v1155, %v1156
        %v1158 = vrot.slane %v1157, 1
        %v1159 = vmax.f32 %v1157, %v1158
        %v1160 = vsel %vm808, %v1130, -inf
        %v1161 = vsel %vm808, %v1131, -inf
        %v1162 = vmax.f32 %v1160, %v1161
        %v1163 = vrot.slane %v1162, 4
        %v1164 = vmax.f32 %v1162, %v1163
        %v1165 = vrot.slane %v1164, 2
        %v1166 = vmax.f32 %v1164, %v1165
        %v1167 = vrot.slane %v1166, 1
        %v1168 = vmax.f32 %v1166, %v1167
        %v1169 = vsel %vm808, %v1132, -inf
        %v1170 = vsel %vm808, %v1133, -inf
        %v1171 = vmax.f32 %v1169, %v1170
        %v1172 = vrot.slane %v1171, 4
        %v1173 = vmax.f32 %v1171, %v1172
        %v1174 = vrot.slane %v1173, 2
        %v1175 = vmax.f32 %v1173, %v1174
        %v1176 = vrot.slane %v1175, 1
        %v1177 = vmax.f32 %v1175, %v1176
        %v1178 = vsel %vm808, %v1134, -inf
        %v1179 = vsel %vm808, %v1135, -inf
        %v1180 = vmax.f32 %v1178, %v1179
        %v1181 = vrot.slane %v1180, 4
        %v1182 = vmax.f32 %v1180, %v1181
        %v1183 = vrot.slane %v1182, 2
        %v1184 = vmax.f32 %v1182, %v1183
        %v1185 = vrot.slane %v1184, 1
        %v1186 = vmax.f32 %v1184, %v1185
        %v1187 = vsel %vm808, %v1136, -inf
        %v1188 = vsel %vm808, %v1137, -inf
        %v1189 = vmax.f32 %v1187, %v1188
        %v1190 = vrot.slane %v1189, 4
        %v1191 = vmax.f32 %v1189, %v1190
        %v1192 = vrot.slane %v1191, 2
        %v1193 = vmax.f32 %v1191, %v1192
        %v1194 = vrot.slane %v1193, 1
        %v1195 = vmax.f32 %v1193, %v1194
        %v1196 = vsel %vm808, %v1138, -inf
        %v1197 = vsel %vm808, %v1139, -inf
        %v1198 = vmax.f32 %v1196, %v1197
        %v1199 = vrot.slane %v1198, 4
        %v1200 = vmax.f32 %v1198, %v1199
        %v1201 = vrot.slane %v1200, 2
        %v1202 = vmax.f32 %v1200, %v1201
        %v1203 = vrot.slane %v1202, 1
        %v1204 = vmax.f32 %v1202, %v1203
        %v1205 = vsel %vm808, %v1140, -inf
        %v1206 = vsel %vm808, %v1141, -inf
        %v1207 = vmax.f32 %v1205, %v1206
        %v1208 = vrot.slane %v1207, 4
        %v1209 = vmax.f32 %v1207, %v1208
        %v1210 = vrot.slane %v1209, 2
        %v1211 = vmax.f32 %v1209, %v1210
        %v1212 = vrot.slane %v1211, 1
        %v1213 = vmax.f32 %v1211, %v1212
        %v1214 = vld [vmem:[%s6] sm:$0xff]
        %v1215 = vld [vmem:[%s6 + $0x8] sm:$0xff]
        %v1216 = vld [vmem:[%s6 + $0x10] sm:$0xff]
        %v1217 = vld [vmem:[%s6 + $0x18] sm:$0xff]
        %v1218 = vld [vmem:[%s7] sm:$0x1]
        %v1220 = vperm.slane %v1218, 0
        %vm1230 = vcmask 1041409
        %v1231 = vsel %vm1230, %v1159, %v1150
        %vm1232 = vcmask 1042434
        %v1233 = vsel %vm1232, %v1168, %v1231
        %vm1234 = vcmask 1043459
        %v1235 = vsel %vm1234, %v1177, %v1233
        %vm1236 = vcmask 1044484
        %v1237 = vsel %vm1236, %v1186, %v1235
        %vm1238 = vcmask 1045509
        %v1239 = vsel %vm1238, %v1195, %v1237
        %vm1240 = vcmask 1046534
        %v1241 = vsel %vm1240, %v1204, %v1239
        %vm1242 = vcmask 1047559
        %v1243 = vsel %vm1242, %v1213, %v1241
        %v1244 = vsel %vm808, %v1243, 0
        %1246 = vmatpush.msra.mxu0 0.0
        %1247 = vmatpush.msra.mxu0 0.0
        %1248 = vmatpush.msra.mxu0 0.0
        %1249 = vmatpush.msra.mxu0 0.0
        %1250 = vmatpush.msra.mxu0 0.0
        %1251 = vmatpush.msra.mxu0 0.0
        %1252 = vmatpush.msra.mxu0 0.0
        %1253 = vmatpush.msra.mxu0 0.0
        %1254 = vmatpush.msra.mxu0 0.0
        %1255 = vmatpush.msra.mxu0 0.0
        %1256 = vmatpush.msra.mxu0 0.0
        %1257 = vmatpush.msra.mxu0 0.0
        %1258 = vmatpush.msra.mxu0 %v1217
        %1259 = vmatpush.msra.mxu0 %v1216
        %1260 = vmatpush.msra.mxu0 %v1215
        %1261 = vmatpush.msra.mxu0 %v1214
        %1262 = vmatmul.f32.gmra.mxu0 %v1244
        %v1263 = vpop.f32.mrf.mxu0
        %v1264 = vadd.f32 %v1220, %v1263
        %1265 = vdwg.mxu0
        %v1266 = vmax.f32 %v1264, 0.0
        %v1267 = vld [vmem:[%s8] sm:$0xff]
        %v1268 = vld [vmem:[%s8 + $0x8] sm:$0xff]
        %v1269 = vld [vmem:[%s9] sm:$0x1]
        %v1271 = vperm.slane %v1269, 0
        %v1274 = vsel %vm436, %v1266, 0
        %1276 = vmatpush.msra.mxu0 0.0
        %1277 = vmatpush.msra.mxu0 0.0
        %1278 = vmatpush.msra.mxu0 0.0
        %1279 = vmatpush.msra.mxu0 0.0
        %1280 = vmatpush.msra.mxu0 0.0
        %1281 = vmatpush.msra.mxu0 0.0
        %1282 = vmatpush.msra.mxu0 0.0
        %1283 = vmatpush.msra.mxu0 0.0
        %1284 = vmatpush.msra.mxu0 0.0
        %1285 = vmatpush.msra.mxu0 0.0
        %1286 = vmatpush.msra.mxu0 0.0
        %1287 = vmatpush.msra.mxu0 0.0
        %1288 = vmatpush.msra.mxu0 0.0
        %1289 = vmatpush.msra.mxu0 0.0
        %1290 = vmatpush.msra.mxu0 %v1268
        %1291 = vmatpush.msra.mxu0 %v1267
        %1292 = vmatmul.f32.gmra.mxu0 %v1274
        %v1293 = vpop.f32.mrf.mxu0
        %v1294 = vadd.f32 %v1271, %v1293
        %1295 = vdwg.mxu0
        %1296 = vmax.xlane.f32.xlu0 %v1294
        %v1297 = vpop.xlane.xlu0 %1296
        %v1298 = vsub.f32 %v1294, %v1297
        %v1299 = vmul.f32 %v1298, 1.442695
        %v1300 = vpow.pop %v1299
        %1301 = vadd.xlane.f32.xlu0 %v1300
        %v1302 = vpop.xlane.xlu0 %1301
        %v1303 = vlog2.pop %v1302
        %v1304 = vmul.f32 %v1303, 0.6931472
        %v1305 = vadd.f32 %v1304, %v1297
        %v1306 = vsub.f32 %v1294, %v1305
        %1307 = vst [vmem:[%s373] sm:$0xff] %v1306
        %s1308 = sand.u32 %s252, 1
        %s1309 = scalar_lea.sflag [#allocation3], %s1308
        %s1310 = sand.u32 %s252, 1
        %s1311 = smul.addr %s1310, 8
        %s1312 = scalar_lea.vmem [#allocation2], %s1311
        // Predicated region
        $region61: #{tpu_custom_call.1} parent=59 // pred_check
          %p1313 = pneg %p262
        $region62: #{tpu_custom_call.1} parent=59 // pred_check_branch
          %1315 = sbr.rel (%p1313) target = $region64
        $region63: #{tpu_custom_call.1} parent=59 // pred_region
          %1317 = vsyncadd %s1309, 0
          %s1318 = smul.addr %s24, 8
          %s1319 = scalar_lea.hbm %s10, %s1318
          %s1321 = sshll.u32 %s1312, 4
          %s1322 = int_to_ptr.vmem [resolvable:$true] %s1321
          %s1323 = sshll.u32 %s1319, 4
          %s1324 = int_to_ptr.hbm [resolvable:$true] %s1323
          %1326 = dma.vmem_to_hbm [thread:$0]  %s1322, 128, %s1324, %s1309
        $region64: #{tpu_custom_call.1} parent=59 // pred_fallthru
          _
      $region60: #{tpu_custom_call.1} parent=5 // pred_fallthru
        _
      %p1327 = scmp.le.s32.totalorder 2, %s19
      // Predicated region
      $region65: #{tpu_custom_call.1} parent=5 // pred_check
        %p1328 = pneg %p1327
      $region66: #{tpu_custom_call.1} parent=5 // pred_check_branch
        %1330 = sbr.rel (%p1328) target = $region68
      $region67: #{tpu_custom_call.1} parent=5 // pred_region
        %s1331 = ssub.s32 %s19, 2
        // Predicated region
        $region69: #{tpu_custom_call.1} parent=67 // pred_check
          %p1332 = pneg %p268
        $region70: #{tpu_custom_call.1} parent=67 // pred_check_branch
          %1334 = sbr.rel (%p1332) target = $region72
        $region71: #{tpu_custom_call.1} parent=67 // pred_region
          %s1335 = sand.u32 %s253, 1
          %s1336 = scalar_lea.sflag [#allocation3], %s1335
          %s1337 = sand.u32 %s253, 1
          %s1338 = smul.addr %s1337, 8
          %s1339 = scalar_lea.vmem [#allocation2], %s1338
          %1341 = dma.done %s1336, 128
        $region72: #{tpu_custom_call.1} parent=67 // pred_fallthru
          _
      $region68: #{tpu_custom_call.1} parent=5 // pred_fallthru
        _
    $region6: #{tpu_custom_call.1} parent=1 // loop_footer
      %s23 = sadd.s32 1, %s19
    $region7: #{tpu_custom_call.1} parent=1 // loop_footer_branch
      %18 = sbr.rel target = $region3
    $region8: #{tpu_custom_call.1} parent=1 // loop_exit
      _
    %1342 = vsyncpa [#allocation3], 1
    %s1343 = scalar_lea.sflag [#allocation3], 1
    %1344 = vsyncpa %s1343, 1

</llo_original>
